<compile_context>
chip_gen: v6e
topology: v6e:2x2x1
jax: 0.10.0
libtpu: 0.0.40
codegen_flags: <defaults>
</compile_context>

<pallas_src>
import jax
import jax.numpy as jnp
from jax.experimental import pallas as pl
from jax.experimental.pallas import tpu as pltpu


def _input_normalize_kernel(x_ref, scale_ref, offset_ref, o_ref):
    # clamp(x, 0, 1) then (x - mean) / std, with the divide pre-folded:
    #   (x - mean) / std == x * (1/std) - mean/std == x * scale - offset
    x = jnp.clip(x_ref[...], 0.0, 1.0)
    o_ref[...] = x * scale_ref[...] - offset_ref[...]


def _round_up(v, m):
    return ((v + m - 1) // m) * m


def input_normalize(x, new_mean, new_std):
    """x: (N, C, H, W) float32; new_mean, new_std: (C,) float32."""
    N, C, H, W = x.shape
    rows = N * C
    cols = H * W

    # ---- glue: flatten spatial dims, fold stats into per-row scale/offset ----
    scale_c = (1.0 / new_std).astype(x.dtype)          # (C,)
    offset_c = (new_mean * scale_c).astype(x.dtype)    # (C,)

    x2d = x.reshape(rows, cols)
    scale2d = jnp.tile(scale_c, (N,)).reshape(rows, 1)
    offset2d = jnp.tile(offset_c, (N,)).reshape(rows, 1)

    # ---- pad to (8, 128)-aligned so every block is sublane/lane dense ----
    rows_p = _round_up(rows, 8)
    cols_p = _round_up(cols, 128)
    if (rows_p, cols_p) != (rows, cols):
        x2d = jnp.pad(x2d, ((0, rows_p - rows), (0, cols_p - cols)))
        scale2d = jnp.pad(scale2d, ((0, rows_p - rows), (0, 0)))
        offset2d = jnp.pad(offset2d, ((0, rows_p - rows), (0, 0)))

    # ---- tile sizes: cap at (512, 1024) f32 = 2 MiB/block -> ~8 MiB pipelined
    # footprint (x + out, double-buffered); safe on v5e's 16 MiB scoped default
    # and well under v7x's 64 MiB physical VMEM. Clamp to the (padded) array
    # dims for small problems; both stay multiples of (8, 128).
    tm = min(512, rows_p)
    tn = min(1024, cols_p)

    grid = (pl.cdiv(rows_p, tm), pl.cdiv(cols_p, tn))

    out2d = pl.pallas_call(
        _input_normalize_kernel,
        out_shape=jax.ShapeDtypeStruct((rows_p, cols_p), x.dtype),
        grid=grid,
        in_specs=[
            pl.BlockSpec((tm, tn), lambda i, j: (i, j)),
            pl.BlockSpec((tm, 1), lambda i, j: (i, 0)),
            pl.BlockSpec((tm, 1), lambda i, j: (i, 0)),
        ],
        out_specs=pl.BlockSpec((tm, tn), lambda i, j: (i, j)),
        compiler_params=pltpu.CompilerParams(
            dimension_semantics=("parallel", "parallel"),
        ),
    )(x2d, scale2d, offset2d)

    # ---- strip padding and restore NCHW ----
    if (rows_p, cols_p) != (rows, cols):
        out2d = out2d[:rows, :cols]
    return out2d.reshape(N, C, H, W)


if __name__ == "__main__":
    key = jax.random.PRNGKey(0)
    kx, km, ks = jax.random.split(key, 3)

    N, C, H, W = 2, 4, 16, 16
    # Inputs slightly outside [0, 1] so the clamp path is exercised.
    x = jax.random.uniform(kx, (N, C, H, W), jnp.float32, -0.25, 1.25)

    # Deterministic "buffer" initialization (the module stores (C,1,1) buffers;
    # here we build (C,) and broadcast inside the wrapper).
    new_mean = jax.random.uniform(km, (C,), jnp.float32, 0.3, 0.6)
    new_std = jax.random.uniform(ks, (C,), jnp.float32, 0.2, 0.4)

    out = input_normalize(x, new_mean, new_std)
    out = jax.block_until_ready(out)

    # Reference check in plain JAX (original clip -> (x - mean) / std form).
    ref = (jnp.clip(x, 0.0, 1.0) - new_mean[None, :, None, None]) / new_std[
        None, :, None, None
    ]
    assert out.shape == (N, C, H, W)
    assert jnp.allclose(out, ref, atol=1e-6, rtol=1e-6)

    print("KERNEL_OK")
</pallas_src>

<mosaic_0001>
module attributes {stable_mosaic.version = 11 : i64} {
  func.func @_input_normalize_kernel(%arg0: i32, %arg1: i32, %arg2: memref<8x256xf32, #tpu.memory_space<vmem>>, %arg3: memref<8x1xf32, #tpu.memory_space<vmem>>, %arg4: memref<8x1xf32, #tpu.memory_space<vmem>>, %arg5: memref<8x256xf32, #tpu.memory_space<vmem>>) attributes {dimension_semantics = [#tpu.dimension_semantics<parallel>, #tpu.dimension_semantics<parallel>], iteration_bounds = array<i64: 1, 1>, scalar_prefetch = 0 : i64, scratch_operands = 0 : i64, tpu.core_type = #tpu.core_type<tc>, window_params = [{transform_indices = @transform_0, window_bounds = array<i64: 8, 256>}, {transform_indices = @transform_1, window_bounds = array<i64: 8, 1>}, {transform_indices = @transform_2, window_bounds = array<i64: 8, 1>}, {transform_indices = @transform_3, window_bounds = array<i64: 8, 256>}]} {
    %c0 = arith.constant 0 : index
    %c0_0 = arith.constant 0 : index
    %0 = vector.load %arg2[%c0, %c0_0] : memref<8x256xf32, #tpu.memory_space<vmem>>, vector<8x256xf32>
    %cst = arith.constant 0.000000e+00 : f32
    %cst_1 = arith.constant 1.000000e+00 : f32
    %1 = vector.broadcast %cst : f32 to vector<8x256xf32>
    %2 = arith.maximumf %1, %0 : vector<8x256xf32>
    %3 = vector.broadcast %cst_1 : f32 to vector<8x256xf32>
    %4 = arith.minimumf %3, %2 : vector<8x256xf32>
    %c0_2 = arith.constant 0 : index
    %c0_3 = arith.constant 0 : index
    %5 = vector.load %arg3[%c0_2, %c0_3] : memref<8x1xf32, #tpu.memory_space<vmem>>, vector<8x1xf32>
    %6 = vector.broadcast %5 : vector<8x1xf32> to vector<8x256xf32>
    %7 = arith.mulf %4, %6 : vector<8x256xf32>
    %c0_4 = arith.constant 0 : index
    %c0_5 = arith.constant 0 : index
    %8 = vector.load %arg4[%c0_4, %c0_5] : memref<8x1xf32, #tpu.memory_space<vmem>>, vector<8x1xf32>
    %9 = vector.broadcast %8 : vector<8x1xf32> to vector<8x256xf32>
    %10 = arith.subf %7, %9 : vector<8x256xf32>
    %c0_6 = arith.constant 0 : index
    %c0_7 = arith.constant 0 : index
    %11 = vector.load %arg5[%c0_6, %c0_7] : memref<8x256xf32, #tpu.memory_space<vmem>>, vector<8x256xf32>
    tpu.vector_store %arg5[%c0_6, %c0_7], %10 {strides = array<i32>} : memref<8x256xf32, #tpu.memory_space<vmem>>, vector<8x256xf32>,
    return
  }
  func.func @transform_0(%arg0: i32, %arg1: i32) -> (i32, i32) {
    %c0_i32 = arith.constant 0 : i32
    return %arg0, %arg1 : i32, i32
  }
  func.func @transform_1(%arg0: i32, %arg1: i32) -> (i32, i32) {
    %c0_i32 = arith.constant 0 : i32
    %c0_i32_0 = arith.constant 0 : i32
    return %arg0, %c0_i32 : i32, i32
  }
  func.func @transform_2(%arg0: i32, %arg1: i32) -> (i32, i32) {
    %c0_i32 = arith.constant 0 : i32
    %c0_i32_0 = arith.constant 0 : i32
    return %arg0, %c0_i32 : i32, i32
  }
  func.func @transform_3(%arg0: i32, %arg1: i32) -> (i32, i32) {
    %c0_i32 = arith.constant 0 : i32
    return %arg0, %arg1 : i32, i32
  }
}

</mosaic_0001>

<llo_original>
// kernel: tpu_custom_call.1
$region0: #{tpu_custom_call.1}
  #allocation0 [shape = 'u32[]', space=smem, size = 0x4, offset = 0x4, fixed_abs, tag = 'smem constant byte address 0x4 - core index']
  #allocation1 [shape = 'u32[144,128]{1,0:T(1,128)}', space=vmem, size = 0x12000, scoped, tag = 'internal scratch']
  %s0 = inlined_call_operand.vmem [shape: f32[8,256], index: 0, kind: input, shape index: {}]
  %s1 = inlined_call_operand.vmem [shape: f32[8,1], index: 1, kind: input, shape index: {}]
  %s2 = inlined_call_operand.vmem [shape: f32[8,1], index: 2, kind: input, shape index: {}]
  %s3 = inlined_call_operand.hbm [shape: f32[8,256], index: 3, kind: output, shape index: {}]
  %s4 = sld [smem:[#allocation0]]
  $region22: #{tpu_custom_call.1} parent=0
    _
  %s6 = ssub.s32 1, %s4
  %s7 = scalar_select 0, %s6, %s4
  $region1: #{tpu_custom_call.1} parent=0
    #allocation2 [shape = 'u8[8192]{0}', space=vmem, size = 0x2000, scoped, tag = 'output window, operand 0, single buffered']
    #allocation3 [shape = 's32[1]{0}', space=sflag, size = 0x4, scoped, tag = 'scoped memory for tpu_custom_call.1']
    %8 = vsyncpa [#allocation3], 0
    // Predicated region
    $region2: #{tpu_custom_call.1} parent=1 // pred_check
      _
    $region3: #{tpu_custom_call.1} parent=1 // pred_check_branch
      %10 = sbr.rel (0) target = $region5
    $region4: #{tpu_custom_call.1} parent=1 // pred_region
      _
    $region5: #{tpu_custom_call.1} parent=1 // pred_fallthru
      _
    // Predicated region
    $region6: #{tpu_custom_call.1} parent=1 // pred_check
      _
    $region7: #{tpu_custom_call.1} parent=1 // pred_check_branch
      %12 = sbr.rel (0) target = $region9
    $region8: #{tpu_custom_call.1} parent=1 // pred_region
      _
    $region9: #{tpu_custom_call.1} parent=1 // pred_fallthru
      _
    // Predicated region
    $region10: #{tpu_custom_call.1} parent=1 // pred_check
      _
    $region11: #{tpu_custom_call.1} parent=1 // pred_check_branch
      %14 = sbr.rel (0) target = $region13
    $region12: #{tpu_custom_call.1} parent=1 // pred_region
      _
    $region13: #{tpu_custom_call.1} parent=1 // pred_fallthru
      _
    %v15 = vld [vmem:[%s0] sm:$0xff]
    %v16 = vld [vmem:[%s0 + $0x8] sm:$0xff]
    %v17 = vmax.f32 %v15, 0.0
    %v18 = vmax.f32 %v16, 0.0
    %v19 = vmin.f32 %v17, 1.0
    %v20 = vmin.f32 %v18, 1.0
    %v21 = vld [vmem:[%s1] sm:$0xff]
    %23 = vset.pattern.permute.xlu0 0
    %24 = vperm.xlu0 %23, %v21
    %v25 = vpop.permute.xlu0 %24
    %v27 = vmul.f32 %v19, %v25
    %v28 = vmul.f32 %v20, %v25
    %v29 = vld [vmem:[%s2] sm:$0xff]
    %31 = vset.pattern.permute.xlu0 0
    %32 = vperm.xlu0 %31, %v29
    %v33 = vpop.permute.xlu0 %32
    %v35 = vsub.f32 %v27, %v33
    %v36 = vsub.f32 %v28, %v33
    %37 = vst [vmem:[#allocation2] sm:$0xff] %v35
    %38 = vst [vmem:[#allocation2 + $0x8] sm:$0xff] %v36
    // Predicated region
    $region14: #{tpu_custom_call.1} parent=1 // pred_check
      _
    $region15: #{tpu_custom_call.1} parent=1 // pred_check_branch
      %40 = sbr.rel (0) target = $region17
    $region16: #{tpu_custom_call.1} parent=1 // pred_region
      %s42 = ssub.s32 256, 256
      %43 = vsyncadd [#allocation3], %s42
      %s45 = sshll.u32 [#allocation2], 4
      %s46 = int_to_ptr.vmem [resolvable:$true] %s45
      %48 = dma.vmem_to_hbm [thread:$0]  %s46, 256, %s3, [#allocation3]
    $region17: #{tpu_custom_call.1} parent=1 // pred_fallthru
      _
    // Predicated region
    $region18: #{tpu_custom_call.1} parent=1 // pred_check
      _
    $region19: #{tpu_custom_call.1} parent=1 // pred_check_branch
      %50 = sbr.rel (0) target = $region21
    $region20: #{tpu_custom_call.1} parent=1 // pred_region
      %51 = dma.done [#allocation3], 256
    $region21: #{tpu_custom_call.1} parent=1 // pred_fallthru
      _
    %52 = vsyncpa [#allocation3], 1

</llo_original>
